<compile_context>
chip_gen: v5e
topology: v5e:2x2
jax: 0.10.0
libtpu: 0.0.40
codegen_flags: <defaults>
</compile_context>

<pallas_src>
import functools

import numpy as np

import jax
import jax.numpy as jnp
from jax.experimental import pallas as pl
from jax.experimental.pallas import tpu as pltpu


# ---------------------------------------------------------------------------
# Pallas kernel: fused (bilinear-up + concat + conv1 + ReLU + conv2 + ReLU)
# on one image.  Each conv = one im2col matmul W_flat(Cout, K*K*C) @ P(K*K*C, HW).
# ---------------------------------------------------------------------------
def _upconv_fused_kernel(x1_ref, x2_ref, coords_ref, u_ref,
                         w1_ref, b1_ref, w2_ref, b2_ref, o_ref,
                         *, H, W, K, pad1, Hv2, Wv2):
    HW = H * W
    pad2 = (K - 1) // 2

    # --- fused bilinear upsample (align_corners=True): one small MXU matmul.
    x1u = jnp.dot(x1_ref[0], u_ref[...], preferred_element_type=jnp.float32)  # (C1, HW)

    # --- torch.cat((up(x1), x2), dim=1): concat ONCE, so every per-tap block
    # below is a single (Cin, HW) slab (8 sublanes = one f32 sublane tile).
    xcat = jnp.concatenate([x1u, x2_ref[0].astype(jnp.float32)], axis=0)      # (Cin, HW)

    # per-pixel (h, w) coordinates, (1, HW) each; replaces two (K*K, HW) f32
    # mask arrays that previously came from HBM.
    hh = coords_ref[0:1, :]
    ww = coords_ref[1:2, :]

    def im2col(x, pad, Hv, Wv):
        # (K*K*C, HW) patch matrix, rows tap-major then channel -- matches the
        # flattened weight layout.  Lane shifts ride the XLU rotate slot via
        # pltpu.roll; out-of-range taps (incl. roll wrap-around) are zeroed by
        # the in-kernel validity mask, which implements the conv zero-padding.
        cols = []
        for ky in range(K):
            dy = ky - pad
            hs = hh + dy
            vh = (hs >= 0) & (hs < Hv)
            for kx in range(K):
                dx = kx - pad
                ws = ww + dx
                valid = vh & (ws >= 0) & (ws < Wv)          # (1, HW) bool
                d = dy * W + dx
                shifted = pltpu.roll(x, (-d) % HW, axis=1) if d != 0 else x
                cols.append(jnp.where(valid, shifted, 0.0))
        # TODO(synk): at production tile sizes switch to tap-accumulation into
        # a VMEM scratch (one live shifted buffer, bf16 operands on v6e/v7x)
        # instead of materializing the K*K-amplified patch matrix.
        return jnp.concatenate(cols, axis=0)

    # ---- conv1 + LeakyReLU(0) == ReLU : one lane-dense MXU matmul ----------
    pat1 = im2col(xcat, pad1, H, W)                        # (K*K*Cin, HW)
    y1 = jnp.dot(w1_ref[...], pat1, preferred_element_type=jnp.float32)
    y1 = jnp.maximum(y1 + b1_ref[...], 0.0)                # (Cout, HW), stays in VMEM

    # ---- conv2 + ReLU : fused, no HBM round trip of the intermediate -------
    pat2 = im2col(y1, pad2, Hv2, Wv2)                      # (K*K*Cout, HW)
    y2 = jnp.dot(w2_ref[...], pat2, preferred_element_type=jnp.float32)
    y2 = jnp.maximum(y2 + b2_ref[...], 0.0)

    o_ref[0] = y2.astype(o_ref.dtype)


# ---------------------------------------------------------------------------
# Static interpolation factor for nn.UpsamplingBilinear2d (align_corners=True).
# ---------------------------------------------------------------------------
def _bilinear_axis_matrix(n_in, n_out):
    """(n_in, n_out) matrix M with out[j] = sum_i M[i, j] * in[i]."""
    M = np.zeros((n_in, n_out), np.float32)
    if n_out <= 1 or n_in <= 1:
        M[0, :] = 1.0
        return M
    s = np.arange(n_out, dtype=np.float64) * (n_in - 1) / (n_out - 1)
    i0 = np.clip(np.floor(s).astype(np.int64), 0, n_in - 1)
    i1 = np.minimum(i0 + 1, n_in - 1)
    w = (s - i0).astype(np.float32)
    cols = np.arange(n_out)
    M[i0, cols] += (1.0 - w)
    M[i1, cols] += w
    return M


# ---------------------------------------------------------------------------
# UpConv forward (NCHW in / NCHW out, like the PyTorch module)
# ---------------------------------------------------------------------------
def upconv_forward(x1, x2, params, *, kernel_size, padding, scale_factor=2):
    N, C1, H1, W1 = x1.shape
    N2, C2, H, W = x2.shape
    K = int(kernel_size)
    pad1 = int(padding)
    Cout, Cin = params["w1"].shape[0], params["w1"].shape[1]
    assert N == N2 and Cin == C1 + C2
    assert H == H1 * scale_factor and W == W1 * scale_factor
    # Flat-lane trick needs the conv1 output grid to fit inside the input grid
    # (true for standard UNet configs: odd K, 0 <= padding <= (K-1)//2).
    assert K % 2 == 1 and 0 <= 2 * pad1 <= K - 1
    Ho = H + 2 * pad1 - (K - 1)
    Wo = W + 2 * pad1 - (K - 1)
    HW, H1W1 = H * W, H1 * W1

    # ---- static constants (one-time per shape/K/pad configuration) ---------
    # TODO(synk): at production feature-map sizes replace the dense kron matrix
    # (H1*W1, H*W) by the two separable (H1,H)/(W1,W) factors inside a
    # row-halo-tiled pipeline; the dense form only suits small maps.
    U = jnp.asarray(np.kron(_bilinear_axis_matrix(H1, H),
                            _bilinear_axis_matrix(W1, W)))           # (H1W1, HW)
    coords = jnp.asarray(np.stack(
        [np.repeat(np.arange(H, dtype=np.int32), W),
         np.tile(np.arange(W, dtype=np.int32), H)], axis=0))         # (2, HW) int32

    # NCHW with spatial flattened == the lane-dense layout the kernel wants
    # (metadata-only reshapes: no transpose / concat / pad HBM passes).
    x1_f = x1.reshape(N, C1, H1W1)
    x2_f = x2.reshape(N, C2, HW)
    # Flatten weights as (Cout, ky*K*Cin + kx*Cin + c) to match im2col rows;
    # channel order [up(x1) channels, x2 channels] reproduces the torch.cat.
    w1f = jnp.transpose(params["w1"], (0, 2, 3, 1)).reshape(Cout, K * K * Cin)
    w2f = jnp.transpose(params["w2"], (0, 2, 3, 1)).reshape(Cout, K * K * Cout)
    b1 = params["b1"].reshape(Cout, 1)
    b2 = params["b2"].reshape(Cout, 1)

    kern = functools.partial(_upconv_fused_kernel, H=H, W=W, K=K, pad1=pad1,
                             Hv2=Ho, Wv2=Wo)

    # advisory cost (conv2 is counted over the full H*W grid the kernel runs on)
    flops = 2 * N * HW * (C1 * H1W1 + K * K * Cin * Cout + K * K * Cout * Cout)
    bytes_accessed = 4 * (N * (C1 * H1W1 + C2 * HW + Cout * HW)
                          + U.size + coords.size + w1f.size + w2f.size
                          + b1.size + b2.size)

    # TODO(synk): at production image sizes add a row-block grid axis with a
    # (K-1)-row halo (marked "parallel" alongside batch for v7x's two cores),
    # cast matmul operands to bf16 on v6e/v7x, and pack several images per grid
    # step when H*W is small so the matmul lane dim reaches >= 2048.
    out_flat = pl.pallas_call(
        kern,
        out_shape=jax.ShapeDtypeStruct((N, Cout, HW), x2.dtype),
        grid=(N,),
        in_specs=[
            pl.BlockSpec((1, C1, H1W1), lambda n: (n, 0, 0)),
            pl.BlockSpec((1, C2, HW), lambda n: (n, 0, 0)),
            pl.BlockSpec((2, HW), lambda n: (0, 0)),
            pl.BlockSpec((H1W1, HW), lambda n: (0, 0)),
            pl.BlockSpec((Cout, K * K * Cin), lambda n: (0, 0)),
            pl.BlockSpec((Cout, 1), lambda n: (0, 0)),
            pl.BlockSpec((Cout, K * K * Cout), lambda n: (0, 0)),
            pl.BlockSpec((Cout, 1), lambda n: (0, 0)),
        ],
        out_specs=pl.BlockSpec((1, Cout, HW), lambda n: (n, 0, 0)),
        compiler_params=pltpu.CompilerParams(
            dimension_semantics=("parallel",),          # batch -> megacore
            vmem_limit_bytes=32 * 1024 * 1024),
        cost_estimate=pl.CostEstimate(flops=flops, transcendentals=0,
                                      bytes_accessed=bytes_accessed),
    )(x1_f, x2_f, coords, U, w1f, b1, w2f, b2)

    out = out_flat.reshape(N, Cout, H, W)
    if (Ho, Wo) != (H, W):
        # TODO(synk): have the kernel write only the valid (Ho, Wo) region
        # (lane-multiple-of-128 block) instead of cropping in XLA.
        out = out[:, :, :Ho, :Wo]
    return out


# ---------------------------------------------------------------------------
# Pure-JAX reference (for correctness check only)
# ---------------------------------------------------------------------------
def upsample_bilinear_align_corners(x_nchw, scale):
    N, C, H, W = x_nchw.shape
    Ho, Wo = H * scale, W * scale

    def coords(n_in, n_out):
        if n_out <= 1 or n_in <= 1:
            z = jnp.zeros((n_out,), jnp.int32)
            return z, z, jnp.zeros((n_out,), x_nchw.dtype)
        s = jnp.arange(n_out, dtype=jnp.float32) * ((n_in - 1) / (n_out - 1))
        i0 = jnp.clip(jnp.floor(s).astype(jnp.int32), 0, n_in - 1)
        i1 = jnp.minimum(i0 + 1, n_in - 1)
        w = (s - i0.astype(jnp.float32)).astype(x_nchw.dtype)
        return i0, i1, w

    y0, y1, wy = coords(H, Ho)
    x0, x1, wx = coords(W, Wo)
    r0 = x_nchw[:, :, y0, :]
    r1 = x_nchw[:, :, y1, :]
    a = r0[:, :, :, x0]
    b = r0[:, :, :, x1]
    c = r1[:, :, :, x0]
    d = r1[:, :, :, x1]
    wy = wy[None, None, :, None]
    wx = wx[None, None, None, :]
    return (a * (1 - wy) * (1 - wx) + b * (1 - wy) * wx
            + c * wy * (1 - wx) + d * wy * wx)


def upconv_reference(x1, x2, params, *, kernel_size, padding, scale_factor=2):
    x1u = upsample_bilinear_align_corners(x1, scale_factor)
    x = jnp.concatenate([x1u, x2], axis=1)

    def conv(z, w, b, p):
        y = jax.lax.conv_general_dilated(
            z, w, (1, 1), [(p, p), (p, p)],
            dimension_numbers=("NCHW", "OIHW", "NCHW"),
            precision=jax.lax.Precision.HIGHEST)
        return jnp.maximum(y + b[None, :, None, None], 0.0)

    y = conv(x, params["w1"], params["b1"], padding)
    y = conv(y, params["w2"], params["b2"], (kernel_size - 1) // 2)
    return y


if __name__ == "__main__":
    key = jax.random.PRNGKey(0)
    k1, k2, k3, k4, k5, k6 = jax.random.split(key, 6)

    # UpConv(in_channels=8, out_channels=4, kernel_size=3, padding, scale_factor=2)
    C1, C2 = 4, 4
    in_channels, out_channels, kernel_size = C1 + C2, 4, 3

    x1 = jax.random.normal(k1, (2, C1, 8, 8), jnp.float32)      # low-res branch
    x2 = jax.random.normal(k2, (2, C2, 16, 16), jnp.float32)    # skip connection

    params = {
        "w1": 0.1 * jax.random.normal(
            k3, (out_channels, in_channels, kernel_size, kernel_size), jnp.float32),
        "b1": 0.1 * jax.random.normal(k4, (out_channels,), jnp.float32),
        "w2": 0.1 * jax.random.normal(
            k5, (out_channels, out_channels, kernel_size, kernel_size), jnp.float32),
        "b2": 0.1 * jax.random.normal(k6, (out_channels,), jnp.float32),
    }

    # padding=1 exercises the same-size path; padding=0 exercises the crop path
    # (was flagged as untested in review).
    for padding in (1, 0):
        fwd = jax.jit(functools.partial(upconv_forward,
                                        kernel_size=kernel_size, padding=padding))
        out = jax.block_until_ready(fwd(x1, x2, params))
        ref = upconv_reference(x1, x2, params,
                               kernel_size=kernel_size, padding=padding)
        assert out.shape == ref.shape, (padding, out.shape, ref.shape)
        err = float(jnp.max(jnp.abs(out - ref)))
        assert jnp.allclose(out, ref, atol=5e-3, rtol=5e-3), \
            f"padding={padding} max abs err {err}"

    print("KERNEL_OK")
</pallas_src>

<mosaic_0001>
module attributes {stable_mosaic.version = 11 : i64} {
  func.func @_upconv_fused_kernel(%arg0: i32, %arg1: memref<1x4x64xf32, #tpu.memory_space<vmem>>, %arg2: memref<1x4x256xf32, #tpu.memory_space<vmem>>, %arg3: memref<2x256xi32, #tpu.memory_space<vmem>>, %arg4: memref<64x256xf32, #tpu.memory_space<vmem>>, %arg5: memref<4x72xf32, #tpu.memory_space<vmem>>, %arg6: memref<4x1xf32, #tpu.memory_space<vmem>>, %arg7: memref<4x36xf32, #tpu.memory_space<vmem>>, %arg8: memref<4x1xf32, #tpu.memory_space<vmem>>, %arg9: memref<1x4x256xf32, #tpu.memory_space<vmem>>) attributes {dimension_semantics = [#tpu.dimension_semantics<parallel>], iteration_bounds = array<i64: 2>, scalar_prefetch = 0 : i64, scratch_operands = 0 : i64, tpu.core_type = #tpu.core_type<tc>, window_params = [{transform_indices = @transform_0, window_bounds = array<i64: 1, 4, 64>}, {transform_indices = @transform_1, window_bounds = array<i64: 1, 4, 256>}, {pipeline_mode = #tpu.pipeline_mode<synchronous>, transform_indices = @transform_2, window_bounds = array<i64: 2, 256>}, {pipeline_mode = #tpu.pipeline_mode<synchronous>, transform_indices = @transform_3, window_bounds = array<i64: 64, 256>}, {pipeline_mode = #tpu.pipeline_mode<synchronous>, transform_indices = @transform_4, window_bounds = array<i64: 4, 72>}, {pipeline_mode = #tpu.pipeline_mode<synchronous>, transform_indices = @transform_5, window_bounds = array<i64: 4, 1>}, {pipeline_mode = #tpu.pipeline_mode<synchronous>, transform_indices = @transform_6, window_bounds = array<i64: 4, 36>}, {pipeline_mode = #tpu.pipeline_mode<synchronous>, transform_indices = @transform_7, window_bounds = array<i64: 4, 1>}, {transform_indices = @transform_8, window_bounds = array<i64: 1, 4, 256>}]} {
    %c0 = arith.constant 0 : index
    %c0_0 = arith.constant 0 : index
    %c0_1 = arith.constant 0 : index
    %0 = vector.load %arg1[%c0, %c0_0, %c0_1] : memref<1x4x64xf32, #tpu.memory_space<vmem>>, vector<1x4x64xf32>
    %1 = vector.shape_cast %0 : vector<1x4x64xf32> to vector<4x64xf32>
    %c0_2 = arith.constant 0 : index
    %c0_3 = arith.constant 0 : index
    %2 = vector.load %arg4[%c0_2, %c0_3] : memref<64x256xf32, #tpu.memory_space<vmem>>, vector<64x256xf32>
    %cst = arith.constant dense<0.000000e+00> : vector<4x256xf32>
    %3 = tpu.matmul %1, %2, %cst {dimension_numbers = #tpu.dot_dimension_numbers<[1], [0], [0], [1], [0, 0, 1, 1], [], []>} : vector<4x64xf32>, vector<64x256xf32>, vector<4x256xf32> -> vector<4x256xf32>
    %c0_4 = arith.constant 0 : index
    %c0_5 = arith.constant 0 : index
    %c0_6 = arith.constant 0 : index
    %4 = vector.load %arg2[%c0_4, %c0_5, %c0_6] : memref<1x4x256xf32, #tpu.memory_space<vmem>>, vector<1x4x256xf32>
    %5 = vector.shape_cast %4 : vector<1x4x256xf32> to vector<4x256xf32>
    %6 = tpu.concatenate %3, %5 in 0 : vector<4x256xf32>, vector<4x256xf32> -> vector<8x256xf32>
    %c0_7 = arith.constant 0 : index
    %c0_8 = arith.constant 0 : index
    %7 = vector.load %arg3[%c0_7, %c0_8] : memref<2x256xi32, #tpu.memory_space<vmem>>, vector<1x256xi32>
    %c1 = arith.constant 1 : index
    %c0_9 = arith.constant 0 : index
    %8 = vector.load %arg3[%c1, %c0_9] : memref<2x256xi32, #tpu.memory_space<vmem>>, vector<1x256xi32>
    %c-1_i32 = arith.constant -1 : i32
    %9 = vector.broadcast %c-1_i32 : i32 to vector<1x256xi32>
    %10 = arith.addi %7, %9 : vector<1x256xi32>
    %c0_i32 = arith.constant 0 : i32
    %11 = vector.broadcast %c0_i32 : i32 to vector<1x256xi32>
    %12 = arith.cmpi sge, %10, %11 : vector<1x256xi32>
    %c16_i32 = arith.constant 16 : i32
    %13 = vector.broadcast %c16_i32 : i32 to vector<1x256xi32>
    %14 = arith.cmpi slt, %10, %13 : vector<1x256xi32>
    %15 = arith.andi %12, %14 : vector<1x256xi1>
    %c-1_i32_10 = arith.constant -1 : i32
    %16 = vector.broadcast %c-1_i32_10 : i32 to vector<1x256xi32>
    %17 = arith.addi %8, %16 : vector<1x256xi32>
    %c0_i32_11 = arith.constant 0 : i32
    %18 = vector.broadcast %c0_i32_11 : i32 to vector<1x256xi32>
    %19 = arith.cmpi sge, %17, %18 : vector<1x256xi32>
    %20 = arith.andi %15, %19 : vector<1x256xi1>
    %c16_i32_12 = arith.constant 16 : i32
    %21 = vector.broadcast %c16_i32_12 : i32 to vector<1x256xi32>
    %22 = arith.cmpi slt, %17, %21 : vector<1x256xi32>
    %23 = arith.andi %20, %22 : vector<1x256xi1>
    %c17_i32 = arith.constant 17 : i32
    %24 = tpu.dynamic_rotate %6 by %c17_i32 dim 1 : vector<8x256xf32>, i32 -> vector<8x256xf32>
    %cst_13 = arith.constant 0.000000e+00 : f32
    %25 = vector.shape_cast %23 : vector<1x256xi1> to vector<1x256xi1>
    %26 = vector.broadcast %25 : vector<1x256xi1> to vector<8x256xi1>
    %27 = vector.broadcast %cst_13 : f32 to vector<8x256xf32>
    %28 = arith.select %26, %24, %27 : vector<8x256xi1>, vector<8x256xf32>
    %c0_i32_14 = arith.constant 0 : i32
    %29 = vector.broadcast %c0_i32_14 : i32 to vector<1x256xi32>
    %30 = arith.addi %8, %29 : vector<1x256xi32>
    %c0_i32_15 = arith.constant 0 : i32
    %31 = vector.broadcast %c0_i32_15 : i32 to vector<1x256xi32>
    %32 = arith.cmpi sge, %30, %31 : vector<1x256xi32>
    %33 = arith.andi %15, %32 : vector<1x256xi1>
    %c16_i32_16 = arith.constant 16 : i32
    %34 = vector.broadcast %c16_i32_16 : i32 to vector<1x256xi32>
    %35 = arith.cmpi slt, %30, %34 : vector<1x256xi32>
    %36 = arith.andi %33, %35 : vector<1x256xi1>
    %c16_i32_17 = arith.constant 16 : i32
    %37 = tpu.dynamic_rotate %6 by %c16_i32_17 dim 1 : vector<8x256xf32>, i32 -> vector<8x256xf32>
    %cst_18 = arith.constant 0.000000e+00 : f32
    %38 = vector.shape_cast %36 : vector<1x256xi1> to vector<1x256xi1>
    %39 = vector.broadcast %38 : vector<1x256xi1> to vector<8x256xi1>
    %40 = vector.broadcast %cst_18 : f32 to vector<8x256xf32>
    %41 = arith.select %39, %37, %40 : vector<8x256xi1>, vector<8x256xf32>
    %c1_i32 = arith.constant 1 : i32
    %42 = vector.broadcast %c1_i32 : i32 to vector<1x256xi32>
    %43 = arith.addi %8, %42 : vector<1x256xi32>
    %c0_i32_19 = arith.constant 0 : i32
    %44 = vector.broadcast %c0_i32_19 : i32 to vector<1x256xi32>
    %45 = arith.cmpi sge, %43, %44 : vector<1x256xi32>
    %46 = arith.andi %15, %45 : vector<1x256xi1>
    %c16_i32_20 = arith.constant 16 : i32
    %47 = vector.broadcast %c16_i32_20 : i32 to vector<1x256xi32>
    %48 = arith.cmpi slt, %43, %47 : vector<1x256xi32>
    %49 = arith.andi %46, %48 : vector<1x256xi1>
    %c15_i32 = arith.constant 15 : i32
    %50 = tpu.dynamic_rotate %6 by %c15_i32 dim 1 : vector<8x256xf32>, i32 -> vector<8x256xf32>
    %cst_21 = arith.constant 0.000000e+00 : f32
    %51 = vector.shape_cast %49 : vector<1x256xi1> to vector<1x256xi1>
    %52 = vector.broadcast %51 : vector<1x256xi1> to vector<8x256xi1>
    %53 = vector.broadcast %cst_21 : f32 to vector<8x256xf32>
    %54 = arith.select %52, %50, %53 : vector<8x256xi1>, vector<8x256xf32>
    %c0_i32_22 = arith.constant 0 : i32
    %55 = vector.broadcast %c0_i32_22 : i32 to vector<1x256xi32>
    %56 = arith.addi %7, %55 : vector<1x256xi32>
    %c0_i32_23 = arith.constant 0 : i32
    %57 = vector.broadcast %c0_i32_23 : i32 to vector<1x256xi32>
    %58 = arith.cmpi sge, %56, %57 : vector<1x256xi32>
    %c16_i32_24 = arith.constant 16 : i32
    %59 = vector.broadcast %c16_i32_24 : i32 to vector<1x256xi32>
    %60 = arith.cmpi slt, %56, %59 : vector<1x256xi32>
    %61 = arith.andi %58, %60 : vector<1x256xi1>
    %c-1_i32_25 = arith.constant -1 : i32
    %62 = vector.broadcast %c-1_i32_25 : i32 to vector<1x256xi32>
    %63 = arith.addi %8, %62 : vector<1x256xi32>
    %c0_i32_26 = arith.constant 0 : i32
    %64 = vector.broadcast %c0_i32_26 : i32 to vector<1x256xi32>
    %65 = arith.cmpi sge, %63, %64 : vector<1x256xi32>
    %66 = arith.andi %61, %65 : vector<1x256xi1>
    %c16_i32_27 = arith.constant 16 : i32
    %67 = vector.broadcast %c16_i32_27 : i32 to vector<1x256xi32>
    %68 = arith.cmpi slt, %63, %67 : vector<1x256xi32>
    %69 = arith.andi %66, %68 : vector<1x256xi1>
    %c1_i32_28 = arith.constant 1 : i32
    %70 = tpu.dynamic_rotate %6 by %c1_i32_28 dim 1 : vector<8x256xf32>, i32 -> vector<8x256xf32>
    %cst_29 = arith.constant 0.000000e+00 : f32
    %71 = vector.shape_cast %69 : vector<1x256xi1> to vector<1x256xi1>
    %72 = vector.broadcast %71 : vector<1x256xi1> to vector<8x256xi1>
    %73 = vector.broadcast %cst_29 : f32 to vector<8x256xf32>
    %74 = arith.select %72, %70, %73 : vector<8x256xi1>, vector<8x256xf32>
    %c0_i32_30 = arith.constant 0 : i32
    %75 = vector.broadcast %c0_i32_30 : i32 to vector<1x256xi32>
    %76 = arith.addi %8, %75 : vector<1x256xi32>
    %c0_i32_31 = arith.constant 0 : i32
    %77 = vector.broadcast %c0_i32_31 : i32 to vector<1x256xi32>
    %78 = arith.cmpi sge, %76, %77 : vector<1x256xi32>
    %79 = arith.andi %61, %78 : vector<1x256xi1>
    %c16_i32_32 = arith.constant 16 : i32
    %80 = vector.broadcast %c16_i32_32 : i32 to vector<1x256xi32>
    %81 = arith.cmpi slt, %76, %80 : vector<1x256xi32>
    %82 = arith.andi %79, %81 : vector<1x256xi1>
    %cst_33 = arith.constant 0.000000e+00 : f32
    %83 = vector.shape_cast %82 : vector<1x256xi1> to vector<1x256xi1>
    %84 = vector.broadcast %83 : vector<1x256xi1> to vector<8x256xi1>
    %85 = vector.broadcast %cst_33 : f32 to vector<8x256xf32>
    %86 = arith.select %84, %6, %85 : vector<8x256xi1>, vector<8x256xf32>
    %c1_i32_34 = arith.constant 1 : i32
    %87 = vector.broadcast %c1_i32_34 : i32 to vector<1x256xi32>
    %88 = arith.addi %8, %87 : vector<1x256xi32>
    %c0_i32_35 = arith.constant 0 : i32
    %89 = vector.broadcast %c0_i32_35 : i32 to vector<1x256xi32>
    %90 = arith.cmpi sge, %88, %89 : vector<1x256xi32>
    %91 = arith.andi %61, %90 : vector<1x256xi1>
    %c16_i32_36 = arith.constant 16 : i32
    %92 = vector.broadcast %c16_i32_36 : i32 to vector<1x256xi32>
    %93 = arith.cmpi slt, %88, %92 : vector<1x256xi32>
    %94 = arith.andi %91, %93 : vector<1x256xi1>
    %c255_i32 = arith.constant 255 : i32
    %95 = tpu.dynamic_rotate %6 by %c255_i32 dim 1 : vector<8x256xf32>, i32 -> vector<8x256xf32>
    %cst_37 = arith.constant 0.000000e+00 : f32
    %96 = vector.shape_cast %94 : vector<1x256xi1> to vector<1x256xi1>
    %97 = vector.broadcast %96 : vector<1x256xi1> to vector<8x256xi1>
    %98 = vector.broadcast %cst_37 : f32 to vector<8x256xf32>
    %99 = arith.select %97, %95, %98 : vector<8x256xi1>, vector<8x256xf32>
    %c1_i32_38 = arith.constant 1 : i32
    %100 = vector.broadcast %c1_i32_38 : i32 to vector<1x256xi32>
    %101 = arith.addi %7, %100 : vector<1x256xi32>
    %c0_i32_39 = arith.constant 0 : i32
    %102 = vector.broadcast %c0_i32_39 : i32 to vector<1x256xi32>
    %103 = arith.cmpi sge, %101, %102 : vector<1x256xi32>
    %c16_i32_40 = arith.constant 16 : i32
    %104 = vector.broadcast %c16_i32_40 : i32 to vector<1x256xi32>
    %105 = arith.cmpi slt, %101, %104 : vector<1x256xi32>
    %106 = arith.andi %103, %105 : vector<1x256xi1>
    %c-1_i32_41 = arith.constant -1 : i32
    %107 = vector.broadcast %c-1_i32_41 : i32 to vector<1x256xi32>
    %108 = arith.addi %8, %107 : vector<1x256xi32>
    %c0_i32_42 = arith.constant 0 : i32
    %109 = vector.broadcast %c0_i32_42 : i32 to vector<1x256xi32>
    %110 = arith.cmpi sge, %108, %109 : vector<1x256xi32>
    %111 = arith.andi %106, %110 : vector<1x256xi1>
    %c16_i32_43 = arith.constant 16 : i32
    %112 = vector.broadcast %c16_i32_43 : i32 to vector<1x256xi32>
    %113 = arith.cmpi slt, %108, %112 : vector<1x256xi32>
    %114 = arith.andi %111, %113 : vector<1x256xi1>
    %c241_i32 = arith.constant 241 : i32
    %115 = tpu.dynamic_rotate %6 by %c241_i32 dim 1 : vector<8x256xf32>, i32 -> vector<8x256xf32>
    %cst_44 = arith.constant 0.000000e+00 : f32
    %116 = vector.shape_cast %114 : vector<1x256xi1> to vector<1x256xi1>
    %117 = vector.broadcast %116 : vector<1x256xi1> to vector<8x256xi1>
    %118 = vector.broadcast %cst_44 : f32 to vector<8x256xf32>
    %119 = arith.select %117, %115, %118 : vector<8x256xi1>, vector<8x256xf32>
    %c0_i32_45 = arith.constant 0 : i32
    %120 = vector.broadcast %c0_i32_45 : i32 to vector<1x256xi32>
    %121 = arith.addi %8, %120 : vector<1x256xi32>
    %c0_i32_46 = arith.constant 0 : i32
    %122 = vector.broadcast %c0_i32_46 : i32 to vector<1x256xi32>
    %123 = arith.cmpi sge, %121, %122 : vector<1x256xi32>
    %124 = arith.andi %106, %123 : vector<1x256xi1>
    %c16_i32_47 = arith.constant 16 : i32
    %125 = vector.broadcast %c16_i32_47 : i32 to vector<1x256xi32>
    %126 = arith.cmpi slt, %121, %125 : vector<1x256xi32>
    %127 = arith.andi %124, %126 : vector<1x256xi1>
    %c240_i32 = arith.constant 240 : i32
    %128 = tpu.dynamic_rotate %6 by %c240_i32 dim 1 : vector<8x256xf32>, i32 -> vector<8x256xf32>
    %cst_48 = arith.constant 0.000000e+00 : f32
    %129 = vector.shape_cast %127 : vector<1x256xi1> to vector<1x256xi1>
    %130 = vector.broadcast %129 : vector<1x256xi1> to vector<8x256xi1>
    %131 = vector.broadcast %cst_48 : f32 to vector<8x256xf32>
    %132 = arith.select %130, %128, %131 : vector<8x256xi1>, vector<8x256xf32>
    %c1_i32_49 = arith.constant 1 : i32
    %133 = vector.broadcast %c1_i32_49 : i32 to vector<1x256xi32>
    %134 = arith.addi %8, %133 : vector<1x256xi32>
    %c0_i32_50 = arith.constant 0 : i32
    %135 = vector.broadcast %c0_i32_50 : i32 to vector<1x256xi32>
    %136 = arith.cmpi sge, %134, %135 : vector<1x256xi32>
    %137 = arith.andi %106, %136 : vector<1x256xi1>
    %c16_i32_51 = arith.constant 16 : i32
    %138 = vector.broadcast %c16_i32_51 : i32 to vector<1x256xi32>
    %139 = arith.cmpi slt, %134, %138 : vector<1x256xi32>
    %140 = arith.andi %137, %139 : vector<1x256xi1>
    %c239_i32 = arith.constant 239 : i32
    %141 = tpu.dynamic_rotate %6 by %c239_i32 dim 1 : vector<8x256xf32>, i32 -> vector<8x256xf32>
    %cst_52 = arith.constant 0.000000e+00 : f32
    %142 = vector.shape_cast %140 : vector<1x256xi1> to vector<1x256xi1>
    %143 = vector.broadcast %142 : vector<1x256xi1> to vector<8x256xi1>
    %144 = vector.broadcast %cst_52 : f32 to vector<8x256xf32>
    %145 = arith.select %143, %141, %144 : vector<8x256xi1>, vector<8x256xf32>
    %146 = tpu.concatenate %28, %41, %54, %74, %86, %99, %119, %132, %145 in 0 : vector<8x256xf32>, vector<8x256xf32>, vector<8x256xf32>, vector<8x256xf32>, vector<8x256xf32>, vector<8x256xf32>, vector<8x256xf32>, vector<8x256xf32>, vector<8x256xf32> -> vector<72x256xf32>
    %c0_53 = arith.constant 0 : index
    %c0_54 = arith.constant 0 : index
    %147 = vector.load %arg5[%c0_53, %c0_54] : memref<4x72xf32, #tpu.memory_space<vmem>>, vector<4x72xf32>
    %cst_55 = arith.constant dense<0.000000e+00> : vector<4x256xf32>
    %148 = tpu.matmul %147, %146, %cst_55 {dimension_numbers = #tpu.dot_dimension_numbers<[1], [0], [0], [1], [0, 0, 1, 1], [], []>} : vector<4x72xf32>, vector<72x256xf32>, vector<4x256xf32> -> vector<4x256xf32>
    %c0_56 = arith.constant 0 : index
    %c0_57 = arith.constant 0 : index
    %149 = vector.load %arg6[%c0_56, %c0_57] : memref<4x1xf32, #tpu.memory_space<vmem>>, vector<4x1xf32>
    %150 = vector.broadcast %149 : vector<4x1xf32> to vector<4x256xf32>
    %151 = arith.addf %148, %150 : vector<4x256xf32>
    %cst_58 = arith.constant 0.000000e+00 : f32
    %152 = vector.broadcast %cst_58 : f32 to vector<4x256xf32>
    %153 = arith.maximumf %151, %152 : vector<4x256xf32>
    %c-1_i32_59 = arith.constant -1 : i32
    %154 = vector.broadcast %c-1_i32_59 : i32 to vector<1x256xi32>
    %155 = arith.addi %7, %154 : vector<1x256xi32>
    %c0_i32_60 = arith.constant 0 : i32
    %156 = vector.broadcast %c0_i32_60 : i32 to vector<1x256xi32>
    %157 = arith.cmpi sge, %155, %156 : vector<1x256xi32>
    %c16_i32_61 = arith.constant 16 : i32
    %158 = vector.broadcast %c16_i32_61 : i32 to vector<1x256xi32>
    %159 = arith.cmpi slt, %155, %158 : vector<1x256xi32>
    %160 = arith.andi %157, %159 : vector<1x256xi1>
    %c-1_i32_62 = arith.constant -1 : i32
    %161 = vector.broadcast %c-1_i32_62 : i32 to vector<1x256xi32>
    %162 = arith.addi %8, %161 : vector<1x256xi32>
    %c0_i32_63 = arith.constant 0 : i32
    %163 = vector.broadcast %c0_i32_63 : i32 to vector<1x256xi32>
    %164 = arith.cmpi sge, %162, %163 : vector<1x256xi32>
    %165 = arith.andi %160, %164 : vector<1x256xi1>
    %c16_i32_64 = arith.constant 16 : i32
    %166 = vector.broadcast %c16_i32_64 : i32 to vector<1x256xi32>
    %167 = arith.cmpi slt, %162, %166 : vector<1x256xi32>
    %168 = arith.andi %165, %167 : vector<1x256xi1>
    %c17_i32_65 = arith.constant 17 : i32
    %169 = tpu.dynamic_rotate %153 by %c17_i32_65 dim 1 : vector<4x256xf32>, i32 -> vector<4x256xf32>
    %cst_66 = arith.constant 0.000000e+00 : f32
    %170 = vector.shape_cast %168 : vector<1x256xi1> to vector<1x256xi1>
    %171 = vector.broadcast %170 : vector<1x256xi1> to vector<4x256xi1>
    %172 = vector.broadcast %cst_66 : f32 to vector<4x256xf32>
    %173 = arith.select %171, %169, %172 : vector<4x256xi1>, vector<4x256xf32>
    %c0_i32_67 = arith.constant 0 : i32
    %174 = vector.broadcast %c0_i32_67 : i32 to vector<1x256xi32>
    %175 = arith.addi %8, %174 : vector<1x256xi32>
    %c0_i32_68 = arith.constant 0 : i32
    %176 = vector.broadcast %c0_i32_68 : i32 to vector<1x256xi32>
    %177 = arith.cmpi sge, %175, %176 : vector<1x256xi32>
    %178 = arith.andi %160, %177 : vector<1x256xi1>
    %c16_i32_69 = arith.constant 16 : i32
    %179 = vector.broadcast %c16_i32_69 : i32 to vector<1x256xi32>
    %180 = arith.cmpi slt, %175, %179 : vector<1x256xi32>
    %181 = arith.andi %178, %180 : vector<1x256xi1>
    %c16_i32_70 = arith.constant 16 : i32
    %182 = tpu.dynamic_rotate %153 by %c16_i32_70 dim 1 : vector<4x256xf32>, i32 -> vector<4x256xf32>
    %cst_71 = arith.constant 0.000000e+00 : f32
    %183 = vector.shape_cast %181 : vector<1x256xi1> to vector<1x256xi1>
    %184 = vector.broadcast %183 : vector<1x256xi1> to vector<4x256xi1>
    %185 = vector.broadcast %cst_71 : f32 to vector<4x256xf32>
    %186 = arith.select %184, %182, %185 : vector<4x256xi1>, vector<4x256xf32>
    %c1_i32_72 = arith.constant 1 : i32
    %187 = vector.broadcast %c1_i32_72 : i32 to vector<1x256xi32>
    %188 = arith.addi %8, %187 : vector<1x256xi32>
    %c0_i32_73 = arith.constant 0 : i32
    %189 = vector.broadcast %c0_i32_73 : i32 to vector<1x256xi32>
    %190 = arith.cmpi sge, %188, %189 : vector<1x256xi32>
    %191 = arith.andi %160, %190 : vector<1x256xi1>
    %c16_i32_74 = arith.constant 16 : i32
    %192 = vector.broadcast %c16_i32_74 : i32 to vector<1x256xi32>
    %193 = arith.cmpi slt, %188, %192 : vector<1x256xi32>
    %194 = arith.andi %191, %193 : vector<1x256xi1>
    %c15_i32_75 = arith.constant 15 : i32
    %195 = tpu.dynamic_rotate %153 by %c15_i32_75 dim 1 : vector<4x256xf32>, i32 -> vector<4x256xf32>
    %cst_76 = arith.constant 0.000000e+00 : f32
    %196 = vector.shape_cast %194 : vector<1x256xi1> to vector<1x256xi1>
    %197 = vector.broadcast %196 : vector<1x256xi1> to vector<4x256xi1>
    %198 = vector.broadcast %cst_76 : f32 to vector<4x256xf32>
    %199 = arith.select %197, %195, %198 : vector<4x256xi1>, vector<4x256xf32>
    %c0_i32_77 = arith.constant 0 : i32
    %200 = vector.broadcast %c0_i32_77 : i32 to vector<1x256xi32>
    %201 = arith.addi %7, %200 : vector<1x256xi32>
    %c0_i32_78 = arith.constant 0 : i32
    %202 = vector.broadcast %c0_i32_78 : i32 to vector<1x256xi32>
    %203 = arith.cmpi sge, %201, %202 : vector<1x256xi32>
    %c16_i32_79 = arith.constant 16 : i32
    %204 = vector.broadcast %c16_i32_79 : i32 to vector<1x256xi32>
    %205 = arith.cmpi slt, %201, %204 : vector<1x256xi32>
    %206 = arith.andi %203, %205 : vector<1x256xi1>
    %c-1_i32_80 = arith.constant -1 : i32
    %207 = vector.broadcast %c-1_i32_80 : i32 to vector<1x256xi32>
    %208 = arith.addi %8, %207 : vector<1x256xi32>
    %c0_i32_81 = arith.constant 0 : i32
    %209 = vector.broadcast %c0_i32_81 : i32 to vector<1x256xi32>
    %210 = arith.cmpi sge, %208, %209 : vector<1x256xi32>
    %211 = arith.andi %206, %210 : vector<1x256xi1>
    %c16_i32_82 = arith.constant 16 : i32
    %212 = vector.broadcast %c16_i32_82 : i32 to vector<1x256xi32>
    %213 = arith.cmpi slt, %208, %212 : vector<1x256xi32>
    %214 = arith.andi %211, %213 : vector<1x256xi1>
    %c1_i32_83 = arith.constant 1 : i32
    %215 = tpu.dynamic_rotate %153 by %c1_i32_83 dim 1 : vector<4x256xf32>, i32 -> vector<4x256xf32>
    %cst_84 = arith.constant 0.000000e+00 : f32
    %216 = vector.shape_cast %214 : vector<1x256xi1> to vector<1x256xi1>
    %217 = vector.broadcast %216 : vector<1x256xi1> to vector<4x256xi1>
    %218 = vector.broadcast %cst_84 : f32 to vector<4x256xf32>
    %219 = arith.select %217, %215, %218 : vector<4x256xi1>, vector<4x256xf32>
    %c0_i32_85 = arith.constant 0 : i32
    %220 = vector.broadcast %c0_i32_85 : i32 to vector<1x256xi32>
    %221 = arith.addi %8, %220 : vector<1x256xi32>
    %c0_i32_86 = arith.constant 0 : i32
    %222 = vector.broadcast %c0_i32_86 : i32 to vector<1x256xi32>
    %223 = arith.cmpi sge, %221, %222 : vector<1x256xi32>
    %224 = arith.andi %206, %223 : vector<1x256xi1>
    %c16_i32_87 = arith.constant 16 : i32
    %225 = vector.broadcast %c16_i32_87 : i32 to vector<1x256xi32>
    %226 = arith.cmpi slt, %221, %225 : vector<1x256xi32>
    %227 = arith.andi %224, %226 : vector<1x256xi1>
    %cst_88 = arith.constant 0.000000e+00 : f32
    %228 = vector.shape_cast %227 : vector<1x256xi1> to vector<1x256xi1>
    %229 = vector.broadcast %228 : vector<1x256xi1> to vector<4x256xi1>
    %230 = vector.broadcast %cst_88 : f32 to vector<4x256xf32>
    %231 = arith.select %229, %153, %230 : vector<4x256xi1>, vector<4x256xf32>
    %c1_i32_89 = arith.constant 1 : i32
    %232 = vector.broadcast %c1_i32_89 : i32 to vector<1x256xi32>
    %233 = arith.addi %8, %232 : vector<1x256xi32>
    %c0_i32_90 = arith.constant 0 : i32
    %234 = vector.broadcast %c0_i32_90 : i32 to vector<1x256xi32>
    %235 = arith.cmpi sge, %233, %234 : vector<1x256xi32>
    %236 = arith.andi %206, %235 : vector<1x256xi1>
    %c16_i32_91 = arith.constant 16 : i32
    %237 = vector.broadcast %c16_i32_91 : i32 to vector<1x256xi32>
    %238 = arith.cmpi slt, %233, %237 : vector<1x256xi32>
    %239 = arith.andi %236, %238 : vector<1x256xi1>
    %c255_i32_92 = arith.constant 255 : i32
    %240 = tpu.dynamic_rotate %153 by %c255_i32_92 dim 1 : vector<4x256xf32>, i32 -> vector<4x256xf32>
    %cst_93 = arith.constant 0.000000e+00 : f32
    %241 = vector.shape_cast %239 : vector<1x256xi1> to vector<1x256xi1>
    %242 = vector.broadcast %241 : vector<1x256xi1> to vector<4x256xi1>
    %243 = vector.broadcast %cst_93 : f32 to vector<4x256xf32>
    %244 = arith.select %242, %240, %243 : vector<4x256xi1>, vector<4x256xf32>
    %c1_i32_94 = arith.constant 1 : i32
    %245 = vector.broadcast %c1_i32_94 : i32 to vector<1x256xi32>
    %246 = arith.addi %7, %245 : vector<1x256xi32>
    %c0_i32_95 = arith.constant 0 : i32
    %247 = vector.broadcast %c0_i32_95 : i32 to vector<1x256xi32>
    %248 = arith.cmpi sge, %246, %247 : vector<1x256xi32>
    %c16_i32_96 = arith.constant 16 : i32
    %249 = vector.broadcast %c16_i32_96 : i32 to vector<1x256xi32>
    %250 = arith.cmpi slt, %246, %249 : vector<1x256xi32>
    %251 = arith.andi %248, %250 : vector<1x256xi1>
    %c-1_i32_97 = arith.constant -1 : i32
    %252 = vector.broadcast %c-1_i32_97 : i32 to vector<1x256xi32>
    %253 = arith.addi %8, %252 : vector<1x256xi32>
    %c0_i32_98 = arith.constant 0 : i32
    %254 = vector.broadcast %c0_i32_98 : i32 to vector<1x256xi32>
    %255 = arith.cmpi sge, %253, %254 : vector<1x256xi32>
    %256 = arith.andi %251, %255 : vector<1x256xi1>
    %c16_i32_99 = arith.constant 16 : i32
    %257 = vector.broadcast %c16_i32_99 : i32 to vector<1x256xi32>
    %258 = arith.cmpi slt, %253, %257 : vector<1x256xi32>
    %259 = arith.andi %256, %258 : vector<1x256xi1>
    %c241_i32_100 = arith.constant 241 : i32
    %260 = tpu.dynamic_rotate %153 by %c241_i32_100 dim 1 : vector<4x256xf32>, i32 -> vector<4x256xf32>
    %cst_101 = arith.constant 0.000000e+00 : f32
    %261 = vector.shape_cast %259 : vector<1x256xi1> to vector<1x256xi1>
    %262 = vector.broadcast %261 : vector<1x256xi1> to vector<4x256xi1>
    %263 = vector.broadcast %cst_101 : f32 to vector<4x256xf32>
    %264 = arith.select %262, %260, %263 : vector<4x256xi1>, vector<4x256xf32>
    %c0_i32_102 = arith.constant 0 : i32
    %265 = vector.broadcast %c0_i32_102 : i32 to vector<1x256xi32>
    %266 = arith.addi %8, %265 : vector<1x256xi32>
    %c0_i32_103 = arith.constant 0 : i32
    %267 = vector.broadcast %c0_i32_103 : i32 to vector<1x256xi32>
    %268 = arith.cmpi sge, %266, %267 : vector<1x256xi32>
    %269 = arith.andi %251, %268 : vector<1x256xi1>
    %c16_i32_104 = arith.constant 16 : i32
    %270 = vector.broadcast %c16_i32_104 : i32 to vector<1x256xi32>
    %271 = arith.cmpi slt, %266, %270 : vector<1x256xi32>
    %272 = arith.andi %269, %271 : vector<1x256xi1>
    %c240_i32_105 = arith.constant 240 : i32
    %273 = tpu.dynamic_rotate %153 by %c240_i32_105 dim 1 : vector<4x256xf32>, i32 -> vector<4x256xf32>
    %cst_106 = arith.constant 0.000000e+00 : f32
    %274 = vector.shape_cast %272 : vector<1x256xi1> to vector<1x256xi1>
    %275 = vector.broadcast %274 : vector<1x256xi1> to vector<4x256xi1>
    %276 = vector.broadcast %cst_106 : f32 to vector<4x256xf32>
    %277 = arith.select %275, %273, %276 : vector<4x256xi1>, vector<4x256xf32>
    %c1_i32_107 = arith.constant 1 : i32
    %278 = vector.broadcast %c1_i32_107 : i32 to vector<1x256xi32>
    %279 = arith.addi %8, %278 : vector<1x256xi32>
    %c0_i32_108 = arith.constant 0 : i32
    %280 = vector.broadcast %c0_i32_108 : i32 to vector<1x256xi32>
    %281 = arith.cmpi sge, %279, %280 : vector<1x256xi32>
    %282 = arith.andi %251, %281 : vector<1x256xi1>
    %c16_i32_109 = arith.constant 16 : i32
    %283 = vector.broadcast %c16_i32_109 : i32 to vector<1x256xi32>
    %284 = arith.cmpi slt, %279, %283 : vector<1x256xi32>
    %285 = arith.andi %282, %284 : vector<1x256xi1>
    %c239_i32_110 = arith.constant 239 : i32
    %286 = tpu.dynamic_rotate %153 by %c239_i32_110 dim 1 : vector<4x256xf32>, i32 -> vector<4x256xf32>
    %cst_111 = arith.constant 0.000000e+00 : f32
    %287 = vector.shape_cast %285 : vector<1x256xi1> to vector<1x256xi1>
    %288 = vector.broadcast %287 : vector<1x256xi1> to vector<4x256xi1>
    %289 = vector.broadcast %cst_111 : f32 to vector<4x256xf32>
    %290 = arith.select %288, %286, %289 : vector<4x256xi1>, vector<4x256xf32>
    %291 = tpu.concatenate %173, %186, %199, %219, %231, %244, %264, %277, %290 in 0 : vector<4x256xf32>, vector<4x256xf32>, vector<4x256xf32>, vector<4x256xf32>, vector<4x256xf32>, vector<4x256xf32>, vector<4x256xf32>, vector<4x256xf32>, vector<4x256xf32> -> vector<36x256xf32>
    %c0_112 = arith.constant 0 : index
    %c0_113 = arith.constant 0 : index
    %292 = vector.load %arg7[%c0_112, %c0_113] : memref<4x36xf32, #tpu.memory_space<vmem>>, vector<4x36xf32>
    %cst_114 = arith.constant dense<0.000000e+00> : vector<4x256xf32>
    %293 = tpu.matmul %292, %291, %cst_114 {dimension_numbers = #tpu.dot_dimension_numbers<[1], [0], [0], [1], [0, 0, 1, 1], [], []>} : vector<4x36xf32>, vector<36x256xf32>, vector<4x256xf32> -> vector<4x256xf32>
    %c0_115 = arith.constant 0 : index
    %c0_116 = arith.constant 0 : index
    %294 = vector.load %arg8[%c0_115, %c0_116] : memref<4x1xf32, #tpu.memory_space<vmem>>, vector<4x1xf32>
    %295 = vector.broadcast %294 : vector<4x1xf32> to vector<4x256xf32>
    %296 = arith.addf %293, %295 : vector<4x256xf32>
    %cst_117 = arith.constant 0.000000e+00 : f32
    %297 = vector.broadcast %cst_117 : f32 to vector<4x256xf32>
    %298 = arith.maximumf %296, %297 : vector<4x256xf32>
    %c0_118 = arith.constant 0 : index
    %c0_119 = arith.constant 0 : index
    %c0_120 = arith.constant 0 : index
    %299 = vector.load %arg9[%c0_118, %c0_119, %c0_120] : memref<1x4x256xf32, #tpu.memory_space<vmem>>, vector<1x4x256xf32>
    %300 = vector.shape_cast %299 : vector<1x4x256xf32> to vector<4x256xf32>
    %301 = vector.shape_cast %298 : vector<4x256xf32> to vector<1x4x256xf32>
    tpu.vector_store %arg9[%c0_118, %c0_119, %c0_120], %301 {strides = array<i32>} : memref<1x4x256xf32, #tpu.memory_space<vmem>>, vector<1x4x256xf32>,
    return
  }
  func.func @transform_0(%arg0: i32) -> (i32, i32, i32) {
    %c0_i32 = arith.constant 0 : i32
    %c0_i32_0 = arith.constant 0 : i32
    %c0_i32_1 = arith.constant 0 : i32
    return %arg0, %c0_i32, %c0_i32_0 : i32, i32, i32
  }
  func.func @transform_1(%arg0: i32) -> (i32, i32, i32) {
    %c0_i32 = arith.constant 0 : i32
    %c0_i32_0 = arith.constant 0 : i32
    %c0_i32_1 = arith.constant 0 : i32
    return %arg0, %c0_i32, %c0_i32_0 : i32, i32, i32
  }
  func.func @transform_2(%arg0: i32) -> (i32, i32) {
    %c0_i32 = arith.constant 0 : i32
    %c0_i32_0 = arith.constant 0 : i32
    %c0_i32_1 = arith.constant 0 : i32
    return %c0_i32, %c0_i32_0 : i32, i32
  }
  func.func @transform_3(%arg0: i32) -> (i32, i32) {
    %c0_i32 = arith.constant 0 : i32
    %c0_i32_0 = arith.constant 0 : i32
    %c0_i32_1 = arith.constant 0 : i32
    return %c0_i32, %c0_i32_0 : i32, i32
  }
  func.func @transform_4(%arg0: i32) -> (i32, i32) {
    %c0_i32 = arith.constant 0 : i32
    %c0_i32_0 = arith.constant 0 : i32
    %c0_i32_1 = arith.constant 0 : i32
    return %c0_i32, %c0_i32_0 : i32, i32
  }
  func.func @transform_5(%arg0: i32) -> (i32, i32) {
    %c0_i32 = arith.constant 0 : i32
    %c0_i32_0 = arith.constant 0 : i32
    %c0_i32_1 = arith.constant 0 : i32
    return %c0_i32, %c0_i32_0 : i32, i32
  }
  func.func @transform_6(%arg0: i32) -> (i32, i32) {
    %c0_i32 = arith.constant 0 : i32
    %c0_i32_0 = arith.constant 0 : i32
    %c0_i32_1 = arith.constant 0 : i32
    return %c0_i32, %c0_i32_0 : i32, i32
  }
  func.func @transform_7(%arg0: i32) -> (i32, i32) {
    %c0_i32 = arith.constant 0 : i32
    %c0_i32_0 = arith.constant 0 : i32
    %c0_i32_1 = arith.constant 0 : i32
    return %c0_i32, %c0_i32_0 : i32, i32
  }
  func.func @transform_8(%arg0: i32) -> (i32, i32, i32) {
    %c0_i32 = arith.constant 0 : i32
    %c0_i32_0 = arith.constant 0 : i32
    %c0_i32_1 = arith.constant 0 : i32
    return %arg0, %c0_i32, %c0_i32_0 : i32, i32, i32
  }
}

</mosaic_0001>

<llo_original>
// kernel: upconv_forward.1
$region0: #{upconv_forward.1}
  #allocation0 [shape = 'u32[]', space=smem, size = 0x4, offset = 0x4, fixed_abs, tag = 'smem constant byte address 0x4 - core index']
  #allocation1 [shape = 'u32[72,128]{1,0:T(1,128)}', space=vmem, size = 0x9000, scoped, tag = 'internal scratch']
  %s0 = inlined_call_operand.vmem [shape: f32[2,4,64], index: 0, kind: input, shape index: {}]
  %s1 = inlined_call_operand.vmem [shape: f32[2,4,256], index: 1, kind: input, shape index: {}]
  %s2 = inlined_call_operand.vmem [shape: s32[2,256], index: 2, kind: input, shape index: {}]
  %s3 = inlined_call_operand.vmem [shape: f32[64,256], index: 3, kind: input, shape index: {}]
  %s4 = inlined_call_operand.vmem [shape: f32[4,72], index: 4, kind: input, shape index: {}]
  %s5 = inlined_call_operand.vmem [shape: f32[4,1], index: 5, kind: input, shape index: {}]
  %s6 = inlined_call_operand.vmem [shape: f32[4,36], index: 6, kind: input, shape index: {}]
  %s7 = inlined_call_operand.vmem [shape: f32[4,1], index: 7, kind: input, shape index: {}]
  %s8 = inlined_call_operand.vmem [shape: f32[2,4,256], index: 8, kind: output, shape index: {}]
  %s9 = sld [smem:[#allocation0]]
  $region65: #{upconv_forward.1} parent=0
    _
  %s11 = ssub.s32 1, %s9
  %s12 = scalar_select 0, %s11, %s9
  loop: start=0, step=1, limit=4
  $region2: #{upconv_forward.1} parent=0 // loop_pre_header
    _
  $region3: #{upconv_forward.1} parent=0 // loop_header
    %s14 = sphi 0, %s18
    %p15 = scmp.ge.s32.totalorder %s14, 4
    %s24 = sphi 0, %s26
    %s27 = sphi 0, %s24
    %s28 = sphi 0, %s27
    %s44 = sphi 0, %s28
    %s50 = sphi 0, %s52
    %s53 = sphi 0, %s50
    %s54 = sphi 0, %s53
    %s70 = sphi 0, %s54
    %s74 = sphi 0, %s74
    %s76 = sphi 0, %s74
    %s77 = sphi 0, %s76
    %s91 = sphi 0, %s77
    %s95 = sphi 0, %s95
    %s97 = sphi 0, %s95
    %s98 = sphi 0, %s97
    %s112 = sphi 0, %s98
    %s116 = sphi 0, %s116
    %s118 = sphi 0, %s116
    %s119 = sphi 0, %s118
    %s133 = sphi 0, %s119
    %s137 = sphi 0, %s137
    %s139 = sphi 0, %s137
    %s140 = sphi 0, %s139
    %s154 = sphi 0, %s140
    %s158 = sphi 0, %s158
    %s160 = sphi 0, %s158
    %s161 = sphi 0, %s160
    %s175 = sphi 0, %s161
    %s179 = sphi 0, %s179
    %s181 = sphi 0, %s179
    %s182 = sphi 0, %s181
    %s196 = sphi 0, %s182
    %s202 = sphi 0, %s204
    %s205 = sphi 0, %s202
    %s206 = sphi 0, %s205
    %s222 = sphi 0, %s206
  $region4: #{upconv_forward.1} parent=0 // loop_header_branch
    %17 = sbr.rel (%p15) target = $region8
  $region5: #{upconv_forward.1} parent=0 // loop_body
    %s19 = ssub.s32 %s14, 1
    %s20 = ssub.s32 %s14, 2
    %s21 = sadd.s32 %s14, 1
    %s22 = ssub.s32 %s14, %s21
    %p23 = scmp.eq.s32.totalorder %s22, 0
    %s25 = sadd.s32 %s24, 1
    %s26 = scalar_select %p23, %s24, %s25
    %p29 = pneg %p23
    %p30 = scmp.eq.s32.totalorder %s14, 1
    %p31 = por %p29, %p30
    %p32 = scmp.ne.s32.totalorder %s24, %s27
    %p33 = scmp.eq.s32.totalorder %s14, 0
    %p34 = por %p32, %p33
    %p35 = scmp.ne.s32.totalorder %s24, %s27
    %p36 = scmp.eq.s32.totalorder %s19, 1
    %p37 = por %p35, %p36
    %p38 = scmp.ne.s32.totalorder %s27, %s28
    %p39 = scmp.eq.s32.totalorder %s19, 0
    %p40 = por %p38, %p39
    %p41 = scmp.ne.s32.totalorder %s27, %s28
    %p42 = scmp.eq.s32.totalorder %s20, 1
    %p43 = por %p41, %p42
    %p45 = scmp.ne.s32.totalorder %s28, %s44
    %p46 = scmp.eq.s32.totalorder %s20, 0
    %p47 = por %p45, %p46
    %s48 = ssub.s32 %s14, %s21
    %p49 = scmp.eq.s32.totalorder %s48, 0
    %s51 = sadd.s32 %s50, 1
    %s52 = scalar_select %p49, %s50, %s51
    %p55 = pneg %p49
    %p56 = scmp.eq.s32.totalorder %s14, 1
    %p57 = por %p55, %p56
    %p58 = scmp.ne.s32.totalorder %s50, %s53
    %p59 = scmp.eq.s32.totalorder %s14, 0
    %p60 = por %p58, %p59
    %p61 = scmp.ne.s32.totalorder %s50, %s53
    %p62 = scmp.eq.s32.totalorder %s19, 1
    %p63 = por %p61, %p62
    %p64 = scmp.ne.s32.totalorder %s53, %s54
    %p65 = scmp.eq.s32.totalorder %s19, 0
    %p66 = por %p64, %p65
    %p67 = scmp.ne.s32.totalorder %s53, %s54
    %p68 = scmp.eq.s32.totalorder %s20, 1
    %p69 = por %p67, %p68
    %p71 = scmp.ne.s32.totalorder %s54, %s70
    %p72 = scmp.eq.s32.totalorder %s20, 0
    %p73 = por %p71, %p72
    %s75 = sadd.s32 %s74, 1
    %p78 = scmp.eq.s32.totalorder %s14, 1
    %p79 = scmp.ne.s32.totalorder %s74, %s76
    %p80 = scmp.eq.s32.totalorder %s14, 0
    %p81 = por %p79, %p80
    %p82 = scmp.ne.s32.totalorder %s74, %s76
    %p83 = scmp.eq.s32.totalorder %s19, 1
    %p84 = por %p82, %p83
    %p85 = scmp.ne.s32.totalorder %s76, %s77
    %p86 = scmp.eq.s32.totalorder %s19, 0
    %p87 = por %p85, %p86
    %p88 = scmp.ne.s32.totalorder %s76, %s77
    %p89 = scmp.eq.s32.totalorder %s20, 1
    %p90 = por %p88, %p89
    %p92 = scmp.ne.s32.totalorder %s77, %s91
    %p93 = scmp.eq.s32.totalorder %s20, 0
    %p94 = por %p92, %p93
    %s96 = sadd.s32 %s95, 1
    %p99 = scmp.eq.s32.totalorder %s14, 1
    %p100 = scmp.ne.s32.totalorder %s95, %s97
    %p101 = scmp.eq.s32.totalorder %s14, 0
    %p102 = por %p100, %p101
    %p103 = scmp.ne.s32.totalorder %s95, %s97
    %p104 = scmp.eq.s32.totalorder %s19, 1
    %p105 = por %p103, %p104
    %p106 = scmp.ne.s32.totalorder %s97, %s98
    %p107 = scmp.eq.s32.totalorder %s19, 0
    %p108 = por %p106, %p107
    %p109 = scmp.ne.s32.totalorder %s97, %s98
    %p110 = scmp.eq.s32.totalorder %s20, 1
    %p111 = por %p109, %p110
    %p113 = scmp.ne.s32.totalorder %s98, %s112
    %p114 = scmp.eq.s32.totalorder %s20, 0
    %p115 = por %p113, %p114
    %s117 = sadd.s32 %s116, 1
    %p120 = scmp.eq.s32.totalorder %s14, 1
    %p121 = scmp.ne.s32.totalorder %s116, %s118
    %p122 = scmp.eq.s32.totalorder %s14, 0
    %p123 = por %p121, %p122
    %p124 = scmp.ne.s32.totalorder %s116, %s118
    %p125 = scmp.eq.s32.totalorder %s19, 1
    %p126 = por %p124, %p125
    %p127 = scmp.ne.s32.totalorder %s118, %s119
    %p128 = scmp.eq.s32.totalorder %s19, 0
    %p129 = por %p127, %p128
    %p130 = scmp.ne.s32.totalorder %s118, %s119
    %p131 = scmp.eq.s32.totalorder %s20, 1
    %p132 = por %p130, %p131
    %p134 = scmp.ne.s32.totalorder %s119, %s133
    %p135 = scmp.eq.s32.totalorder %s20, 0
    %p136 = por %p134, %p135
    %s138 = sadd.s32 %s137, 1
    %p141 = scmp.eq.s32.totalorder %s14, 1
    %p142 = scmp.ne.s32.totalorder %s137, %s139
    %p143 = scmp.eq.s32.totalorder %s14, 0
    %p144 = por %p142, %p143
    %p145 = scmp.ne.s32.totalorder %s137, %s139
    %p146 = scmp.eq.s32.totalorder %s19, 1
    %p147 = por %p145, %p146
    %p148 = scmp.ne.s32.totalorder %s139, %s140
    %p149 = scmp.eq.s32.totalorder %s19, 0
    %p150 = por %p148, %p149
    %p151 = scmp.ne.s32.totalorder %s139, %s140
    %p152 = scmp.eq.s32.totalorder %s20, 1
    %p153 = por %p151, %p152
    %p155 = scmp.ne.s32.totalorder %s140, %s154
    %p156 = scmp.eq.s32.totalorder %s20, 0
    %p157 = por %p155, %p156
    %s159 = sadd.s32 %s158, 1
    %p162 = scmp.eq.s32.totalorder %s14, 1
    %p163 = scmp.ne.s32.totalorder %s158, %s160
    %p164 = scmp.eq.s32.totalorder %s14, 0
    %p165 = por %p163, %p164
    %p166 = scmp.ne.s32.totalorder %s158, %s160
    %p167 = scmp.eq.s32.totalorder %s19, 1
    %p168 = por %p166, %p167
    %p169 = scmp.ne.s32.totalorder %s160, %s161
    %p170 = scmp.eq.s32.totalorder %s19, 0
    %p171 = por %p169, %p170
    %p172 = scmp.ne.s32.totalorder %s160, %s161
    %p173 = scmp.eq.s32.totalorder %s20, 1
    %p174 = por %p172, %p173
    %p176 = scmp.ne.s32.totalorder %s161, %s175
    %p177 = scmp.eq.s32.totalorder %s20, 0
    %p178 = por %p176, %p177
    %s180 = sadd.s32 %s179, 1
    %p183 = scmp.eq.s32.totalorder %s14, 1
    %p184 = scmp.ne.s32.totalorder %s179, %s181
    %p185 = scmp.eq.s32.totalorder %s14, 0
    %p186 = por %p184, %p185
    %p187 = scmp.ne.s32.totalorder %s179, %s181
    %p188 = scmp.eq.s32.totalorder %s19, 1
    %p189 = por %p187, %p188
    %p190 = scmp.ne.s32.totalorder %s181, %s182
    %p191 = scmp.eq.s32.totalorder %s19, 0
    %p192 = por %p190, %p191
    %p193 = scmp.ne.s32.totalorder %s181, %s182
    %p194 = scmp.eq.s32.totalorder %s20, 1
    %p195 = por %p193, %p194
    %p197 = scmp.ne.s32.totalorder %s182, %s196
    %p198 = scmp.eq.s32.totalorder %s20, 0
    %p199 = por %p197, %p198
    %s200 = ssub.s32 %s14, %s21
    %p201 = scmp.eq.s32.totalorder %s200, 0
    %s203 = sadd.s32 %s202, 1
    %s204 = scalar_select %p201, %s202, %s203
    %p207 = pneg %p201
    %p208 = scmp.eq.s32.totalorder %s14, 1
    %p209 = por %p207, %p208
    %p210 = scmp.ne.s32.totalorder %s202, %s205
    %p211 = scmp.eq.s32.totalorder %s14, 0
    %p212 = por %p210, %p211
    %p213 = scmp.ne.s32.totalorder %s202, %s205
    %p214 = scmp.eq.s32.totalorder %s19, 1
    %p215 = por %p213, %p214
    %p216 = scmp.ne.s32.totalorder %s205, %s206
    %p217 = scmp.eq.s32.totalorder %s19, 0
    %p218 = por %p216, %p217
    %p219 = scmp.ne.s32.totalorder %s205, %s206
    %p220 = scmp.eq.s32.totalorder %s20, 1
    %p221 = por %p219, %p220
    %p223 = scmp.ne.s32.totalorder %s206, %s222
    %p224 = scmp.eq.s32.totalorder %s20, 0
    %p225 = por %p223, %p224
    %p226 = scmp.le.s32.totalorder 1, %s14
    %p227 = scmp.lt.s32.totalorder %s14, 3
    %p228 = pnand %p226, %p227
    %p229 = pneg %p228
    // Predicated region
    $region9: #{upconv_forward.1} parent=5 // pred_check
      _
    $region10: #{upconv_forward.1} parent=5 // pred_check_branch
      %231 = sbr.rel (%p228) target = $region12
    $region11: #{upconv_forward.1} parent=5 // pred_region
      %s232 = ssub.s32 %s14, 1
      // Predicated region
      $region13: #{upconv_forward.1} parent=11 // pred_check
        %p233 = pneg %p87
      $region14: #{upconv_forward.1} parent=11 // pred_check_branch
        %235 = sbr.rel (%p233) target = $region16
      $region15: #{upconv_forward.1} parent=11 // pred_region
        _
      $region16: #{upconv_forward.1} parent=11 // pred_fallthru
        _
      // Predicated region
      $region17: #{upconv_forward.1} parent=11 // pred_check
        %p236 = pneg %p108
      $region18: #{upconv_forward.1} parent=11 // pred_check_branch
        %238 = sbr.rel (%p236) target = $region20
      $region19: #{upconv_forward.1} parent=11 // pred_region
        _
      $region20: #{upconv_forward.1} parent=11 // pred_fallthru
        _
      // Predicated region
      $region21: #{upconv_forward.1} parent=11 // pred_check
        %p239 = pneg %p129
      $region22: #{upconv_forward.1} parent=11 // pred_check_branch
        %241 = sbr.rel (%p239) target = $region24
      $region23: #{upconv_forward.1} parent=11 // pred_region
        _
      $region24: #{upconv_forward.1} parent=11 // pred_fallthru
        _
      // Predicated region
      $region25: #{upconv_forward.1} parent=11 // pred_check
        %p242 = pneg %p150
      $region26: #{upconv_forward.1} parent=11 // pred_check_branch
        %244 = sbr.rel (%p242) target = $region28
      $region27: #{upconv_forward.1} parent=11 // pred_region
        _
      $region28: #{upconv_forward.1} parent=11 // pred_fallthru
        _
      // Predicated region
      $region29: #{upconv_forward.1} parent=11 // pred_check
        %p245 = pneg %p171
      $region30: #{upconv_forward.1} parent=11 // pred_check_branch
        %247 = sbr.rel (%p245) target = $region32
      $region31: #{upconv_forward.1} parent=11 // pred_region
        _
      $region32: #{upconv_forward.1} parent=11 // pred_fallthru
        _
      // Predicated region
      $region33: #{upconv_forward.1} parent=11 // pred_check
        %p248 = pneg %p192
      $region34: #{upconv_forward.1} parent=11 // pred_check_branch
        %250 = sbr.rel (%p248) target = $region36
      $region35: #{upconv_forward.1} parent=11 // pred_region
        _
      $region36: #{upconv_forward.1} parent=11 // pred_fallthru
        _
    $region12: #{upconv_forward.1} parent=5 // pred_fallthru
      _
    %p251 = scmp.lt.s32.totalorder %s14, 2
    // Predicated region
    $region37: #{upconv_forward.1} parent=5 // pred_check
      %p252 = pneg %p251
    $region38: #{upconv_forward.1} parent=5 // pred_check_branch
      %254 = sbr.rel (%p252) target = $region40
    $region39: #{upconv_forward.1} parent=5 // pred_region
      // Predicated region
      $region41: #{upconv_forward.1} parent=39 // pred_check
        %p255 = pneg %p34
      $region42: #{upconv_forward.1} parent=39 // pred_check_branch
        %257 = sbr.rel (%p255) target = $region44
      $region43: #{upconv_forward.1} parent=39 // pred_region
        %p258 = scmp.lt.s32.totalorder %s14, 1
        %s259 = scalar_select %p258, %s14, 1
        %s260 = smul.addr %s259, 4
        %s261 = scalar_lea.vmem %s0, %s260
      $region44: #{upconv_forward.1} parent=39 // pred_fallthru
        _
      // Predicated region
      $region45: #{upconv_forward.1} parent=39 // pred_check
        %p262 = pneg %p60
      $region46: #{upconv_forward.1} parent=39 // pred_check_branch
        %264 = sbr.rel (%p262) target = $region48
      $region47: #{upconv_forward.1} parent=39 // pred_region
        %p265 = scmp.lt.s32.totalorder %s14, 1
        %s266 = scalar_select %p265, %s14, 1
        %s267 = smul.addr %s266, 2
        %s268 = smul.addr %s267, 4
        %s269 = scalar_lea.vmem %s1, %s268
      $region48: #{upconv_forward.1} parent=39 // pred_fallthru
        _
    $region40: #{upconv_forward.1} parent=5 // pred_fallthru
      _
    %p270 = scmp.le.s32.totalorder 1, %s14
    %p271 = scmp.lt.s32.totalorder %s14, 3
    %p272 = pnand %p270, %p271
    %p273 = pneg %p272
    // Predicated region
    $region49: #{upconv_forward.1} parent=5 // pred_check
      _
    $region50: #{upconv_forward.1} parent=5 // pred_check_branch
      %275 = sbr.rel (%p272) target = $region52
    $region51: #{upconv_forward.1} parent=5 // pred_region
      %s276 = ssub.s32 %s14, 1
      %p277 = scmp.lt.s32.totalorder %s19, 1
      %s278 = scalar_select %p277, %s19, 1
      %s279 = smul.addr %s278, 4
      %s280 = scalar_lea.vmem %s0, %s279
      %p281 = pneg %p40
      %p282 = pneg %p37
      %p283 = scmp.lt.s32.totalorder %s19, 1
      %s284 = scalar_select %p283, %s19, 1
      %s285 = smul.addr %s284, 2
      %s286 = smul.addr %s285, 4
      %s287 = scalar_lea.vmem %s1, %s286
      %p288 = pneg %p66
      %p289 = pneg %p63
      %p290 = pneg %p87
      %p291 = pneg %p84
      %p292 = pneg %p108
      %p293 = pneg %p105
      %p294 = pneg %p129
      %p295 = pneg %p126
      %p296 = pneg %p150
      %p297 = pneg %p147
      %p298 = pneg %p171
      %p299 = pneg %p168
      %p300 = pneg %p192
      %p301 = pneg %p189
      %p302 = pneg %p218
      %p303 = pneg %p215
      %p304 = scmp.lt.s32.totalorder %s19, 1
      %s305 = scalar_select %p304, %s19, 1
      %s306 = smul.addr %s305, 2
      %s307 = smul.addr %s306, 4
      %s308 = scalar_lea.vmem %s8, %s307
      %p309 = scmp.lt.s32.totalorder %s19, 1
      %s310 = scalar_select %p309, %s19, 1
      %s311 = smul.addr %s310, 4
      %s312 = scalar_lea.vmem %s0, %s311
      %p313 = scmp.lt.s32.totalorder %s19, 1
      %s314 = scalar_select %p313, %s19, 1
      %s315 = smul.addr %s314, 2
      %s316 = smul.addr %s315, 4
      %s317 = scalar_lea.vmem %s1, %s316
      %p318 = scmp.lt.s32.totalorder %s19, 1
      %s319 = scalar_select %p318, %s19, 1
      %s320 = smul.addr %s319, 2
      %s321 = smul.addr %s320, 4
      %s322 = scalar_lea.vmem %s8, %s321
      %v323 = vld [vmem:[%s312] sm:$0xf]
      %v324 = vld [vmem:[%s3] sm:$0xff]
      %v325 = vld [vmem:[%s3 + $0x8] sm:$0xff]
      %v326 = vld [vmem:[%s3 + $0x10] sm:$0xff]
      %v327 = vld [vmem:[%s3 + $0x18] sm:$0xff]
      %v328 = vld [vmem:[%s3 + $0x20] sm:$0xff]
      %v329 = vld [vmem:[%s3 + $0x28] sm:$0xff]
      %v330 = vld [vmem:[%s3 + $0x30] sm:$0xff]
      %v331 = vld [vmem:[%s3 + $0x38] sm:$0xff]
      %v332 = vld [vmem:[%s3 + $0x40] sm:$0xff]
      %v333 = vld [vmem:[%s3 + $0x48] sm:$0xff]
      %v334 = vld [vmem:[%s3 + $0x50] sm:$0xff]
      %v335 = vld [vmem:[%s3 + $0x58] sm:$0xff]
      %v336 = vld [vmem:[%s3 + $0x60] sm:$0xff]
      %v337 = vld [vmem:[%s3 + $0x68] sm:$0xff]
      %v338 = vld [vmem:[%s3 + $0x70] sm:$0xff]
      %v339 = vld [vmem:[%s3 + $0x78] sm:$0xff]
      %vm340 = vcmask 523264
      %v342 = vsel %vm340, %v323, 0
      %344 = vmatpush.msra.mxu0 0.0
      %345 = vmatpush.msra.mxu0 0.0
      %346 = vmatpush.msra.mxu0 0.0
      %347 = vmatpush.msra.mxu0 0.0
      %348 = vmatpush.msra.mxu0 0.0
      %349 = vmatpush.msra.mxu0 0.0
      %350 = vmatpush.msra.mxu0 0.0
      %351 = vmatpush.msra.mxu0 0.0
      %352 = vmatpush.msra.mxu0 %v338
      %353 = vmatpush.msra.mxu0 %v336
      %354 = vmatpush.msra.mxu0 %v334
      %355 = vmatpush.msra.mxu0 %v332
      %356 = vmatpush.msra.mxu0 %v330
      %357 = vmatpush.msra.mxu0 %v328
      %358 = vmatpush.msra.mxu0 %v326
      %359 = vmatpush.msra.mxu0 %v324
      %360 = vmatmul.f32.gmra.mxu0 %v342
      %v361 = vpop.f32.mrf.mxu0
      %v362 = vadd.f32 0.0, %v361
      %363 = vdwg.mxu0
      %364 = vmatpush.msra.mxu0 0.0
      %365 = vmatpush.msra.mxu0 0.0
      %366 = vmatpush.msra.mxu0 0.0
      %367 = vmatpush.msra.mxu0 0.0
      %368 = vmatpush.msra.mxu0 0.0
      %369 = vmatpush.msra.mxu0 0.0
      %370 = vmatpush.msra.mxu0 0.0
      %371 = vmatpush.msra.mxu0 0.0
      %372 = vmatpush.msra.mxu0 %v339
      %373 = vmatpush.msra.mxu0 %v337
      %374 = vmatpush.msra.mxu0 %v335
      %375 = vmatpush.msra.mxu0 %v333
      %376 = vmatpush.msra.mxu0 %v331
      %377 = vmatpush.msra.mxu0 %v329
      %378 = vmatpush.msra.mxu0 %v327
      %379 = vmatpush.msra.mxu0 %v325
      %380 = vmatmul.f32.gmra.mxu0 %v342
      %v381 = vpop.f32.mrf.mxu0
      %v382 = vadd.f32 0.0, %v381
      %383 = vdwg.mxu0
      %v384 = vld [vmem:[%s317] sm:$0xff]
      %s386 = scalar_lea.vmem [#allocation1], 1
      %387 = vst [vmem:[%s386] ss:$2 sm:$0xff] %v384
      %v388 = vld.sshfl [vmem:[#allocation1] sm:$0xff pattern:$0x75316420]
      %v389 = vld.sshfl [vmem:[#allocation1 + $0x8] sm:$0xff pattern:$0x75316420]
      %vm392 = vcmask 1043456
      %v393 = vsel %vm392, %v362, %v388
      %v394 = vsel %vm392, %v382, %v389
      %v395 = vld [vmem:[%s2] ss:$2 sm:$0x3]
      %s396 = scalar_lea.vmem %s2, 1
      %v397 = vld [vmem:[%s396] ss:$2 sm:$0x3]
      %v398 = vadd.s32 %v395, 4294967295
      %vm399 = vcmp.ge.s32.totalorder %v398, 0
      %vm400 = vcmp.lt.s32.totalorder %v398, 16
      %vm401 = vmand %vm399, %vm400
      %v402 = vadd.s32 %v397, 4294967295
      %vm403 = vcmp.ge.s32.totalorder %v402, 0
      %vm404 = vmand %vm401, %vm403
      %vm405 = vcmp.lt.s32.totalorder %v402, 16
      %vm406 = vmand %vm404, %vm405
      %407 = vrot.lane.b32.xlu0 %v393, 17
      %v408 = vpop.permute.xlu0 %407
      %409 = vrot.lane.b32.xlu0 %v394, 17
      %v410 = vpop.permute.xlu0 %409
      %v411 = vlaneseq
      %v412 = vand.u32 %v411, 127
      %vm413 = vcmp.lt.s32.totalorder %v412, 17
      %v414 = vsel %vm413, %v408, %v410
      %v415 = vsel %vm413, %v410, %v408
      %v416 = vsel %vm406, 1, 0
      %v417 = vperm.slane %v416, 0
      %v418 = vperm.slane %v416, 1
      %vm419 = vcmp.eq.s32.totalorder %v417, 1
      %vm420 = vcmp.eq.s32.totalorder %v418, 1
      %v421 = vsel %vm419, %v415, 0.0
      %v422 = vsel %vm420, %v414, 0.0
      %vm423 = vcmp.ge.s32.totalorder %v397, 0
      %vm424 = vmand %vm401, %vm423
      %vm425 = vcmp.lt.s32.totalorder %v397, 16
      %vm426 = vmand %vm424, %vm425
      %427 = vrot.lane.b32.xlu0 %v393, 16
      %v428 = vpop.permute.xlu0 %427
      %429 = vrot.lane.b32.xlu0 %v394, 16
      %v430 = vpop.permute.xlu0 %429
      %vm431 = vcmp.lt.s32.totalorder %v412, 16
      %v432 = vsel %vm431, %v428, %v430
      %v433 = vsel %vm431, %v430, %v428
      %v434 = vsel %vm426, 1, 0
      %v435 = vperm.slane %v434, 0
      %v436 = vperm.slane %v434, 1
      %vm437 = vcmp.eq.s32.totalorder %v435, 1
      %vm438 = vcmp.eq.s32.totalorder %v436, 1
      %v439 = vsel %vm437, %v433, 0.0
      %v440 = vsel %vm438, %v432, 0.0
      %v441 = vadd.s32 %v397, 1
      %vm442 = vcmp.ge.s32.totalorder %v441, 0
      %vm443 = vmand %vm401, %vm442
      %vm444 = vcmp.lt.s32.totalorder %v441, 16
      %vm445 = vmand %vm443, %vm444
      %446 = vrot.lane.b32.xlu0 %v393, 15
      %v447 = vpop.permute.xlu0 %446
      %448 = vrot.lane.b32.xlu0 %v394, 15
      %v449 = vpop.permute.xlu0 %448
      %vm450 = vcmp.lt.s32.totalorder %v412, 15
      %v451 = vsel %vm450, %v447, %v449
      %v452 = vsel %vm450, %v449, %v447
      %v453 = vsel %vm445, 1, 0
      %v454 = vperm.slane %v453, 0
      %v455 = vperm.slane %v453, 1
      %vm456 = vcmp.eq.s32.totalorder %v454, 1
      %vm457 = vcmp.eq.s32.totalorder %v455, 1
      %v458 = vsel %vm456, %v452, 0.0
      %v459 = vsel %vm457, %v451, 0.0
      %vm460 = vcmp.ge.s32.totalorder %v395, 0
      %vm461 = vcmp.lt.s32.totalorder %v395, 16
      %vm462 = vmand %vm460, %vm461
      %vm463 = vmand %vm462, %vm403
      %vm464 = vmand %vm463, %vm405
      %465 = vrot.lane.b32.xlu0 %v393, 1
      %v466 = vpop.permute.xlu0 %465
      %467 = vrot.lane.b32.xlu0 %v394, 1
      %v468 = vpop.permute.xlu0 %467
      %vm469 = vcmp.lt.s32.totalorder %v412, 1
      %v470 = vsel %vm469, %v466, %v468
      %v471 = vsel %vm469, %v468, %v466
      %v472 = vsel %vm464, 1, 0
      %v473 = vperm.slane %v472, 0
      %v474 = vperm.slane %v472, 1
      %vm475 = vcmp.eq.s32.totalorder %v473, 1
      %vm476 = vcmp.eq.s32.totalorder %v474, 1
      %v477 = vsel %vm475, %v471, 0.0
      %v478 = vsel %vm476, %v470, 0.0
      %vm479 = vmand %vm462, %vm423
      %vm480 = vmand %vm479, %vm425
      %v481 = vsel %vm480, 1, 0
      %v482 = vperm.slane %v481, 0
      %v483 = vperm.slane %v481, 1
      %vm484 = vcmp.eq.s32.totalorder %v482, 1
      %vm485 = vcmp.eq.s32.totalorder %v483, 1
      %v486 = vsel %vm484, %v393, 0.0
      %v487 = vsel %vm485, %v394, 0.0
      %vm488 = vmand %vm462, %vm442
      %vm489 = vmand %vm488, %vm444
      %490 = vrot.lane.b32.xlu0 %v393, 127
      %v491 = vpop.permute.xlu0 %490
      %492 = vrot.lane.b32.xlu0 %v394, 127
      %v493 = vpop.permute.xlu0 %492
      %vm494 = vcmp.lt.s32.totalorder %v412, 127
      %v495 = vsel %vm494, %v491, %v493
      %v496 = vsel %vm494, %v493, %v491
      %v497 = vsel %vm489, 1, 0
      %v498 = vperm.slane %v497, 0
      %v499 = vperm.slane %v497, 1
      %vm500 = vcmp.eq.s32.totalorder %v498, 1
      %vm501 = vcmp.eq.s32.totalorder %v499, 1
      %v502 = vsel %vm500, %v495, 0.0
      %v503 = vsel %vm501, %v496, 0.0
      %v504 = vadd.s32 %v395, 1
      %vm505 = vcmp.ge.s32.totalorder %v504, 0
      %vm506 = vcmp.lt.s32.totalorder %v504, 16
      %vm507 = vmand %vm505, %vm506
      %vm508 = vmand %vm507, %vm403
      %vm509 = vmand %vm508, %vm405
      %510 = vrot.lane.b32.xlu0 %v393, 113
      %v511 = vpop.permute.xlu0 %510
      %512 = vrot.lane.b32.xlu0 %v394, 113
      %v513 = vpop.permute.xlu0 %512
      %vm514 = vcmp.lt.s32.totalorder %v412, 113
      %v515 = vsel %vm514, %v511, %v513
      %v516 = vsel %vm514, %v513, %v511
      %v517 = vsel %vm509, 1, 0
      %v518 = vperm.slane %v517, 0
      %v519 = vperm.slane %v517, 1
      %vm520 = vcmp.eq.s32.totalorder %v518, 1
      %vm521 = vcmp.eq.s32.totalorder %v519, 1
      %v522 = vsel %vm520, %v515, 0.0
      %v523 = vsel %vm521, %v516, 0.0
      %vm524 = vmand %vm507, %vm423
      %vm525 = vmand %vm524, %vm425
      %526 = vrot.lane.b32.xlu0 %v393, 112
      %v527 = vpop.permute.xlu0 %526
      %528 = vrot.lane.b32.xlu0 %v394, 112
      %v529 = vpop.permute.xlu0 %528
      %vm530 = vcmp.lt.s32.totalorder %v412, 112
      %v531 = vsel %vm530, %v527, %v529
      %v532 = vsel %vm530, %v529, %v527
      %v533 = vsel %vm525, 1, 0
      %v534 = vperm.slane %v533, 0
      %v535 = vperm.slane %v533, 1
      %vm536 = vcmp.eq.s32.totalorder %v534, 1
      %vm537 = vcmp.eq.s32.totalorder %v535, 1
      %v538 = vsel %vm536, %v531, 0.0
      %v539 = vsel %vm537, %v532, 0.0
      %vm540 = vmand %vm507, %vm442
      %vm541 = vmand %vm540, %vm444
      %542 = vrot.lane.b32.xlu0 %v393, 111
      %v543 = vpop.permute.xlu0 %542
      %544 = vrot.lane.b32.xlu0 %v394, 111
      %v545 = vpop.permute.xlu0 %544
      %vm546 = vcmp.lt.s32.totalorder %v412, 111
      %v547 = vsel %vm546, %v543, %v545
      %v548 = vsel %vm546, %v545, %v543
      %v549 = vsel %vm541, 1, 0
      %v550 = vperm.slane %v549, 0
      %v551 = vperm.slane %v549, 1
      %vm552 = vcmp.eq.s32.totalorder %v550, 1
      %vm553 = vcmp.eq.s32.totalorder %v551, 1
      %v554 = vsel %vm552, %v547, 0.0
      %v555 = vsel %vm553, %v548, 0.0
      %v556 = vld [vmem:[%s4] sm:$0xf]
      %v557 = vld [vmem:[%s5] sm:$0xf]
      %559 = vset.pattern.permute.xlu0 0
      %560 = vperm.xlu0 %559, %v557
      %v561 = vpop.permute.xlu0 %560
      %vm563 = vcmask 588800
      %v565 = vsel %vm563, %v556, 0
      %567 = vmatpush.msra.mxu0 0.0
      %568 = vmatpush.msra.mxu0 0.0
      %569 = vmatpush.msra.mxu0 0.0
      %570 = vmatpush.msra.mxu0 0.0
      %571 = vmatpush.msra.mxu0 0.0
      %572 = vmatpush.msra.mxu0 0.0
      %573 = vmatpush.msra.mxu0 0.0
      %574 = vmatpush.msra.mxu0 %v554
      %575 = vmatpush.msra.mxu0 %v538
      %576 = vmatpush.msra.mxu0 %v522
      %577 = vmatpush.msra.mxu0 %v502
      %578 = vmatpush.msra.mxu0 %v486
      %579 = vmatpush.msra.mxu0 %v477
      %580 = vmatpush.msra.mxu0 %v458
      %581 = vmatpush.msra.mxu0 %v439
      %582 = vmatpush.msra.mxu0 %v421
      %583 = vmatmul.f32.gmra.mxu0 %v565
      %v584 = vpop.f32.mrf.mxu0
      %v585 = vadd.f32 %v561, %v584
      %586 = vdwg.mxu0
      %587 = vmatpush.msra.mxu0 0.0
      %588 = vmatpush.msra.mxu0 0.0
      %589 = vmatpush.msra.mxu0 0.0
      %590 = vmatpush.msra.mxu0 0.0
      %591 = vmatpush.msra.mxu0 0.0
      %592 = vmatpush.msra.mxu0 0.0
      %593 = vmatpush.msra.mxu0 0.0
      %594 = vmatpush.msra.mxu0 %v555
      %595 = vmatpush.msra.mxu0 %v539
      %596 = vmatpush.msra.mxu0 %v523
      %597 = vmatpush.msra.mxu0 %v503
      %598 = vmatpush.msra.mxu0 %v487
      %599 = vmatpush.msra.mxu0 %v478
      %600 = vmatpush.msra.mxu0 %v459
      %601 = vmatpush.msra.mxu0 %v440
      %602 = vmatpush.msra.mxu0 %v422
      %603 = vmatmul.f32.gmra.mxu0 %v565
      %v604 = vpop.f32.mrf.mxu0
      %v605 = vadd.f32 %v561, %v604
      %606 = vdwg.mxu0
      %v607 = vmax.f32 %v585, 0.0
      %v608 = vmax.f32 %v605, 0.0
      %609 = vrot.lane.b32.xlu0 %v607, 17
      %v610 = vpop.permute.xlu0 %609
      %611 = vrot.lane.b32.xlu0 %v608, 17
      %v612 = vpop.permute.xlu0 %611
      %v613 = vsel %vm413, %v610, %v612
      %v614 = vsel %vm413, %v612, %v610
      %v615 = vsel %vm419, %v614, 0.0
      %v616 = vsel %vm420, %v613, 0.0
      %617 = vrot.lane.b32.xlu0 %v607, 16
      %v618 = vpop.permute.xlu0 %617
      %619 = vrot.lane.b32.xlu0 %v608, 16
      %v620 = vpop.permute.xlu0 %619
      %v621 = vsel %vm431, %v618, %v620
      %v622 = vsel %vm431, %v620, %v618
      %v623 = vsel %vm437, %v622, 0.0
      %v624 = vsel %vm438, %v621, 0.0
      %625 = vrot.lane.b32.xlu0 %v607, 15
      %v626 = vpop.permute.xlu0 %625
      %627 = vrot.lane.b32.xlu0 %v608, 15
      %v628 = vpop.permute.xlu0 %627
      %v629 = vsel %vm450, %v626, %v628
      %v630 = vsel %vm450, %v628, %v626
      %v631 = vsel %vm456, %v630, 0.0
      %v632 = vsel %vm457, %v629, 0.0
      %633 = vrot.lane.b32.xlu0 %v607, 1
      %v634 = vpop.permute.xlu0 %633
      %635 = vrot.lane.b32.xlu0 %v608, 1
      %v636 = vpop.permute.xlu0 %635
      %v637 = vsel %vm469, %v634, %v636
      %v638 = vsel %vm469, %v636, %v634
      %v639 = vsel %vm475, %v638, 0.0
      %v640 = vsel %vm476, %v637, 0.0
      %v641 = vsel %vm484, %v607, 0.0
      %v642 = vsel %vm485, %v608, 0.0
      %643 = vrot.lane.b32.xlu0 %v607, 127
      %v644 = vpop.permute.xlu0 %643
      %645 = vrot.lane.b32.xlu0 %v608, 127
      %v646 = vpop.permute.xlu0 %645
      %v647 = vsel %vm494, %v644, %v646
      %v648 = vsel %vm494, %v646, %v644
      %v649 = vsel %vm500, %v647, 0.0
      %v650 = vsel %vm501, %v648, 0.0
      %651 = vrot.lane.b32.xlu0 %v607, 113
      %v652 = vpop.permute.xlu0 %651
      %653 = vrot.lane.b32.xlu0 %v608, 113
      %v654 = vpop.permute.xlu0 %653
      %v655 = vsel %vm514, %v652, %v654
      %v656 = vsel %vm514, %v654, %v652
      %v657 = vsel %vm520, %v655, 0.0
      %v658 = vsel %vm521, %v656, 0.0
      %659 = vrot.lane.b32.xlu0 %v607, 112
      %v660 = vpop.permute.xlu0 %659
      %661 = vrot.lane.b32.xlu0 %v608, 112
      %v662 = vpop.permute.xlu0 %661
      %v663 = vsel %vm530, %v660, %v662
      %v664 = vsel %vm530, %v662, %v660
      %v665 = vsel %vm536, %v663, 0.0
      %v666 = vsel %vm537, %v664, 0.0
      %667 = vrot.lane.b32.xlu0 %v607, 111
      %v668 = vpop.permute.xlu0 %667
      %669 = vrot.lane.b32.xlu0 %v608, 111
      %v670 = vpop.permute.xlu0 %669
      %v671 = vsel %vm546, %v668, %v670
      %v672 = vsel %vm546, %v670, %v668
      %v673 = vsel %vm552, %v671, 0.0
      %v674 = vsel %vm553, %v672, 0.0
      %v677 = vrot.slane %v623, 4
      %v678 = vrot.slane %v624, 4
      %v683 = vrot.slane %v639, 4
      %v684 = vrot.slane %v640, 4
      %v689 = vrot.slane %v649, 4
      %v690 = vrot.slane %v650, 4
      %v695 = vrot.slane %v665, 4
      %v696 = vrot.slane %v666, 4
      %v699 = vsel %vm392, %v615, %v677
      %v700 = vsel %vm392, %v616, %v678
      %v701 = vsel %vm392, %v631, %v683
      %v702 = vsel %vm392, %v632, %v684
      %v703 = vsel %vm392, %v641, %v689
      %v704 = vsel %vm392, %v642, %v690
      %v705 = vsel %vm392, %v657, %v695
      %v706 = vsel %vm392, %v658, %v696
      %v707 = vld [vmem:[%s6] sm:$0xf]
      %v708 = vld [vmem:[%s7] sm:$0xf]
      %710 = vset.pattern.permute.xlu0 0
      %711 = vperm.xlu0 %710, %v708
      %v712 = vpop.permute.xlu0 %711
      %vm714 = vcmask 293888
      %v716 = vsel %vm714, %v707, 0
      %v719 = vsel %vm392, %v673, 0
      %v722 = vsel %vm392, %v674, 0
      %724 = vmatpush.msra.mxu0 0.0
      %725 = vmatpush.msra.mxu0 0.0
      %726 = vmatpush.msra.mxu0 0.0
      %727 = vmatpush.msra.mxu0 0.0
      %728 = vmatpush.msra.mxu0 0.0
      %729 = vmatpush.msra.mxu0 0.0
      %730 = vmatpush.msra.mxu0 0.0
      %731 = vmatpush.msra.mxu0 0.0
      %732 = vmatpush.msra.mxu0 0.0
      %733 = vmatpush.msra.mxu0 0.0
      %734 = vmatpush.msra.mxu0 0.0
      %735 = vmatpush.msra.mxu0 %v719
      %736 = vmatpush.msra.mxu0 %v705
      %737 = vmatpush.msra.mxu0 %v703
      %738 = vmatpush.msra.mxu0 %v701
      %739 = vmatpush.msra.mxu0 %v699
      %740 = vmatmul.f32.gmra.mxu0 %v716
      %v741 = vpop.f32.mrf.mxu0
      %v742 = vadd.f32 %v712, %v741
      %743 = vdwg.mxu0
      %744 = vmatpush.msra.mxu0 0.0
      %745 = vmatpush.msra.mxu0 0.0
      %746 = vmatpush.msra.mxu0 0.0
      %747 = vmatpush.msra.mxu0 0.0
      %748 = vmatpush.msra.mxu0 0.0
      %749 = vmatpush.msra.mxu0 0.0
      %750 = vmatpush.msra.mxu0 0.0
      %751 = vmatpush.msra.mxu0 0.0
      %752 = vmatpush.msra.mxu0 0.0
      %753 = vmatpush.msra.mxu0 0.0
      %754 = vmatpush.msra.mxu0 0.0
      %755 = vmatpush.msra.mxu0 %v722
      %756 = vmatpush.msra.mxu0 %v706
      %757 = vmatpush.msra.mxu0 %v704
      %758 = vmatpush.msra.mxu0 %v702
      %759 = vmatpush.msra.mxu0 %v700
      %760 = vmatmul.f32.gmra.mxu0 %v716
      %v761 = vpop.f32.mrf.mxu0
      %v762 = vadd.f32 %v712, %v761
      %763 = vdwg.mxu0
      %v764 = vmax.f32 %v742, 0.0
      %v765 = vmax.f32 %v762, 0.0
      %v768 = vrot.slane %v765, 4
      %v769 = vsel %vm392, %v764, %v768
      %771 = vst [vmem:[%s322] sm:$0xff] %v769
      %p772 = scmp.lt.s32.totalorder %s19, 1
      %s773 = scalar_select %p772, %s19, 1
      %s774 = smul.addr %s773, 2
      %s775 = smul.addr %s774, 4
      %s776 = scalar_lea.vmem %s8, %s775
      // Predicated region
      $region53: #{upconv_forward.1} parent=51 // pred_check
        %p777 = pneg %p215
      $region54: #{upconv_forward.1} parent=51 // pred_check_branch
        %779 = sbr.rel (%p777) target = $region56
      $region55: #{upconv_forward.1} parent=51 // pred_region
        _
      $region56: #{upconv_forward.1} parent=51 // pred_fallthru
        _
    $region52: #{upconv_forward.1} parent=5 // pred_fallthru
      _
    %p780 = scmp.le.s32.totalorder 2, %s14
    // Predicated region
    $region57: #{upconv_forward.1} parent=5 // pred_check
      %p781 = pneg %p780
    $region58: #{upconv_forward.1} parent=5 // pred_check_branch
      %783 = sbr.rel (%p781) target = $region60
    $region59: #{upconv_forward.1} parent=5 // pred_region
      %s784 = ssub.s32 %s14, 2
      // Predicated region
      $region61: #{upconv_forward.1} parent=59 // pred_check
        %p785 = pneg %p221
      $region62: #{upconv_forward.1} parent=59 // pred_check_branch
        %787 = sbr.rel (%p785) target = $region64
      $region63: #{upconv_forward.1} parent=59 // pred_region
        %p788 = scmp.lt.s32.totalorder %s20, 1
        %s789 = scalar_select %p788, %s20, 1
        %s790 = smul.addr %s789, 2
        %s791 = smul.addr %s790, 4
        %s792 = scalar_lea.vmem %s8, %s791
      $region64: #{upconv_forward.1} parent=59 // pred_fallthru
        _
    $region60: #{upconv_forward.1} parent=5 // pred_fallthru
      _
  $region6: #{upconv_forward.1} parent=0 // loop_footer
    %s18 = sadd.s32 1, %s14
  $region7: #{upconv_forward.1} parent=0 // loop_footer_branch
    %13 = sbr.rel target = $region3
  $region8: #{upconv_forward.1} parent=0 // loop_exit
    _

</llo_original>
